<compile_context>
chip_gen: v6e
topology: v6e:2x2x1
jax: 0.10.0
libtpu: 0.0.40
codegen_flags: <defaults>
</compile_context>

<pallas_src>
import jax
import jax.numpy as jnp
from jax.experimental import pallas as pl
from jax.experimental.pallas import tpu as pltpu

# ---- config (small, consistent with the module's forward) ----
BATCH      = 8
WORD_DIM   = 32
HIDDEN_DIM = 32
ATT_DIM    = 16
ASPECT_DIM = 16
VOCAB_SZ   = 128
DROPOUT_P  = 0.1   # eval-mode dropout == identity
SLAB       = 128   # packed activation / weight lane width


# =============================== kernel =====================================
def decoder_kernel(xslab_ref, h0_ref, wgru_ref, consts_ref, wfin_ref, bfin_ref,
                   out_ref, hid_ref):
    """One decode step; grid axis 0 iterates over tokens with weights resident.

    xslab_ref : (B, 128)  per-step slab  [x_t | 0 | gamma_u | gamma_i | beta_u | beta_i]
    hid_ref   : (B, 32)   revisited output block used as the hidden-state carry
    consts_ref: (2, 128)  row0 = [w10_g | w10_h | b10 | 0],  row1 = packed GRU bias
    """
    f32 = jnp.float32
    t = pl.program_id(0)

    # Initialize the carried hidden state from h0 on the first step.
    @pl.when(t == 0)
    def _():
        hid_ref[...] = h0_ref[...]

    base   = xslab_ref[...]                      # (B, 128)
    h      = hid_ref[...]                        # (B, 32)  previous hidden
    consts = consts_ref[...]                     # (2, 128)

    # ---------------- GRU cell (seq step): ONE fused MXU dot -----------------
    # dropout on x: inference mode -> identity.
    # TODO(synk): training-mode dropout RNG not implemented.
    # W_gru columns: [ r 0:32 | z 32:64 | n_x 64:96 | n_h 96:128 ]; gamma/beta
    # rows are zero so only x/h lanes contribute.
    act = jnp.concatenate([base[:, 0:32], h, base[:, 64:128]], axis=1)   # (B,128)
    gates = (jnp.dot(act, wgru_ref[...], preferred_element_type=f32)
             + consts[1:2, :])                                           # + GRU bias
    rz = jax.nn.sigmoid(gates[:, 0:64])          # r and z in one EUP pass
    r  = rz[:, 0:32]
    z  = rz[:, 32:64]
    n  = jnp.tanh(gates[:, 64:96] + r * gates[:, 96:128])
    h_new = (1.0 - z) * n + z * h                # (B, 32)
    hid_ref[...] = h_new                         # carry for the next step

    # -------- eq.10 attention over {gamma_u, gamma_i}: VPU mul + lane reduce --
    watt = consts[0:1, :]
    w10g = watt[:, 0:16]
    w10h = watt[:, 16:48]
    b10  = watt[:, 48:49]
    gu = base[:, 64:80]
    gi = base[:, 80:96]
    qh  = jnp.sum(h_new * w10h, axis=-1, keepdims=True) + b10            # (B, 1)
    s_u = jnp.tanh(jnp.sum(gu * w10g, axis=-1, keepdims=True) + qh)
    s_i = jnp.tanh(jnp.sum(gi * w10g, axis=-1, keepdims=True) + qh)
    e_u = jnp.exp(s_u)
    e_i = jnp.exp(s_i)
    # matches torch `a_4 = sum + 1e-06`; approx reciprocal runs on the EUP slot
    inv = pl.reciprocal(e_u + e_i + 1e-6, approx=True)
    a_2_t = (e_u * inv) * gu + (e_i * inv) * gi                          # (B, 16)

    # ------- folded eq.11/12/13 + aspect-mask projection: ONE lane-dense dot --
    # Build the modified slab in registers (no scratch store/reload):
    #   h -> h_new, gamma_u -> a_2_t; gamma_i lanes hit all-zero W_fin rows.
    slab = jnp.concatenate([base[:, 0:32], h_new, a_2_t, base[:, 80:128]], axis=1)
    out_ref[...] = (jnp.dot(slab, wfin_ref[...], preferred_element_type=f32)
                    + bfin_ref[...])
    # note: `word_probit = linear_x(h)` in the torch code is dead (not returned) -> omitted.


# ----------------------- host-side weight composition -----------------------
def compose_decoder_weights(params, review_aspect_mask):
    """Pack raw per-block params into the kernel weight slabs.  Call ONCE per
    decode (hoisted out of the per-token path)."""
    f32 = jnp.float32
    p = params
    maskT = review_aspect_mask.T.astype(f32)                      # (aspect, vocab)

    # GRU slab: rows follow the activation-lane layout, cols = [r | z | n_x | n_h].
    wg = jnp.zeros((SLAB, SLAB), f32)
    wg = wg.at[0:32,   0:32 ].set(p["wih_r"]).at[32:64,  0:32 ].set(p["whh_r"])
    wg = wg.at[0:32,  32:64 ].set(p["wih_z"]).at[32:64, 32:64 ].set(p["whh_z"])
    wg = wg.at[0:32,  64:96 ].set(p["wih_n"])
    wg = wg.at[32:64, 96:128].set(p["whh_n"])

    # consts: row 0 = eq.10 attention row [w10_g(16) | w10_h(32) | b10(1) | 0],
    #         row 1 = packed GRU bias [b_r | b_z | b_in | b_hn] (zero after reinit()).
    consts = jnp.zeros((2, SLAB), f32)
    consts = consts.at[0, 0:16].set(p["w10_g"][:, 0])
    consts = consts.at[0, 16:48].set(p["w10_h"][:, 0])
    consts = consts.at[0, 48].set(p["b10"][0, 0])
    b_gru = jnp.concatenate([p["bih_r"] + p["bhh_r"],
                             p["bih_z"] + p["bhh_z"],
                             p["bih_n"], p["bhh_n"]], axis=0)     # (128,)
    consts = consts.at[1, :].set(b_gru)

    # Fold eq.11 -> eq.12 -> mask into the vocab projection (all linear, exact):
    #   out = x @ (w12_x @ M) + h_new @ (w13_h + w12_h @ M) + a_2_t @ w13_a
    #         + bu @ (w11_u @ w12_s @ M) + bi @ (w11_i @ w12_s @ M)
    #         + b13 + (b11 @ w12_s + b12) @ M
    w12s_m = p["w12_s"] @ maskT                                   # (aspect, V)
    wf = jnp.zeros((SLAB, VOCAB_SZ), f32)
    wf = wf.at[0:32   ].set(p["w12_x"] @ maskT)                   # x lanes
    wf = wf.at[32:64  ].set(p["w13_h"] + p["w12_h"] @ maskT)      # h_new lanes
    wf = wf.at[64:80  ].set(p["w13_a"])                           # a_2_t lanes
    # rows 80:96 (gamma_i lanes) stay zero
    wf = wf.at[96:112 ].set(p["w11_u"] @ w12s_m)                  # beta_u lanes
    wf = wf.at[112:128].set(p["w11_i"] @ w12s_m)                  # beta_i lanes
    bf = p["b13"] + (p["b11"] @ p["w12_s"] + p["b12"]) @ maskT    # (1, V)
    return {"w_gru": wg, "consts": consts, "w_fin": wf, "b_fin": bf}


# ------------------------------ decode wrapper ------------------------------
def decoder_decode(weights, x_seq, h0, gamma_u, gamma_i, beta_u, beta_i):
    """Run T decode steps inside ONE pallas_call (weights stay VMEM-resident).

    x_seq: (T, B, WORD_DIM); h0: (B, HIDDEN_DIM)
    returns (logits (T, B, VOCAB_SZ), h_final (B, HIDDEN_DIM))
    """
    f32 = jnp.float32
    T, B, W = x_seq.shape
    assert W == WORD_DIM
    V = weights["w_fin"].shape[1]

    # Pack per-step activation slabs once (hoisted out of the token loop):
    # lanes [x_t | 0 (h placeholder) | gamma_u | gamma_i | beta_u | beta_i].
    gb = jnp.concatenate([gamma_u, gamma_i, beta_u, beta_i], axis=1).astype(f32)
    x_slab = jnp.concatenate(
        [x_seq.astype(f32),
         jnp.zeros((T, B, HIDDEN_DIM), f32),
         jnp.broadcast_to(gb[None, :, :], (T, B, 2 * (ATT_DIM + ASPECT_DIM)))],
        axis=2)                                                   # (T, B, 128)

    cost = pl.CostEstimate(
        flops=int(T * 2 * B * SLAB * (SLAB + V)),
        transcendentals=int(T * B * (2 * HIDDEN_DIM + HIDDEN_DIM + 5)),
        bytes_accessed=int(4 * (T * B * SLAB + T * B * V + SLAB * SLAB
                                + 2 * SLAB + SLAB * V + V + 2 * B * HIDDEN_DIM)),
    )

    grid_spec = pltpu.PrefetchScalarGridSpec(
        num_scalar_prefetch=0,
        grid=(T,),
        in_specs=[
            pl.BlockSpec((None, B, SLAB), lambda t: (t, 0, 0)),   # per-step act slab
            pl.BlockSpec((B, HIDDEN_DIM), lambda t: (0, 0)),      # h0 (resident)
            pl.BlockSpec((SLAB, SLAB),    lambda t: (0, 0)),      # W_gru (resident)
            pl.BlockSpec((2, SLAB),       lambda t: (0, 0)),      # consts (resident)
            pl.BlockSpec((SLAB, V),       lambda t: (0, 0)),      # W_fin (resident)
            pl.BlockSpec((1, V),          lambda t: (0, 0)),      # b_fin (resident)
        ],
        out_specs=[
            pl.BlockSpec((None, B, V),    lambda t: (t, 0, 0)),   # per-step logits
            pl.BlockSpec((B, HIDDEN_DIM), lambda t: (0, 0)),      # carried hidden
        ],
    )

    logits, h_fin = pl.pallas_call(
        decoder_kernel,
        out_shape=(jax.ShapeDtypeStruct((T, B, V), f32),
                   jax.ShapeDtypeStruct((B, HIDDEN_DIM), f32)),
        grid_spec=grid_spec,
        compiler_params=pltpu.CompilerParams(dimension_semantics=("arbitrary",)),
        cost_estimate=cost,
    )(x_slab, h0.astype(f32), weights["w_gru"], weights["consts"],
      weights["w_fin"], weights["b_fin"])
    return logits, h_fin


def decoder_forward(params, input_vector, hidden_state, gamma_u, gamma_i,
                    beta_u, beta_i, review_aspect_mask, weights=None):
    """Module-equivalent single-step forward (seq len 1), matching the torch API."""
    if weights is None:
        weights = compose_decoder_weights(params, review_aspect_mask)
    B = input_vector.shape[1]
    h0 = hidden_state.reshape(B, HIDDEN_DIM)
    logits, h_fin = decoder_decode(weights, input_vector, h0,
                                   gamma_u, gamma_i, beta_u, beta_i)
    return logits[0], h_fin.reshape(1, B, HIDDEN_DIM)


# ----------------------- deterministic parameter init -----------------------
def _xavier_t(key, in_f, out_f, fan_in, fan_out):
    """Xavier-uniform chunk with the *full* layer's fan, returned as (in_f, out_f)."""
    bound = (6.0 / (fan_in + fan_out)) ** 0.5
    return jax.random.uniform(key, (in_f, out_f), jnp.float32, -bound, bound)


def init_params(key):
    ks = jax.random.split(key, 8)
    H = HIDDEN_DIM
    p = {}
    # GRU: weight_ih (3H, Dw), weight_hh (3H, H); gates ordered [r, z, n]; biases zeroed.
    wih_t = _xavier_t(ks[0], WORD_DIM, 3 * H, WORD_DIM, 3 * H)
    whh_t = _xavier_t(ks[1], H, 3 * H, H, 3 * H)
    p["wih_r"], p["wih_z"], p["wih_n"] = wih_t[:, :H], wih_t[:, H:2*H], wih_t[:, 2*H:]
    p["whh_r"], p["whh_z"], p["whh_n"] = whh_t[:, :H], whh_t[:, H:2*H], whh_t[:, 2*H:]
    for name in ("bih_r", "bih_z", "bih_n", "bhh_r", "bhh_z", "bhh_n"):
        p[name] = jnp.zeros((H,), jnp.float32)   # nn.init.zeros_ in reinit()
    # linear_eq_10: (att + hidden) -> 1
    fi, fo = ATT_DIM + HIDDEN_DIM, 1
    w10 = _xavier_t(ks[2], fi, fo, fi, fo)
    p["w10_g"], p["w10_h"] = w10[:ATT_DIM], w10[ATT_DIM:]
    p["b10"] = jnp.zeros((1, 1), jnp.float32)
    # linear_eq_11: 2*aspect -> aspect
    fi, fo = 2 * ASPECT_DIM, ASPECT_DIM
    w11 = _xavier_t(ks[3], fi, fo, fi, fo)
    p["w11_u"], p["w11_i"] = w11[:ASPECT_DIM], w11[ASPECT_DIM:]
    p["b11"] = jnp.zeros((1, ASPECT_DIM), jnp.float32)
    # linear_eq_12: (aspect + hidden + word) -> aspect   (cat order: s_ui, hidden, word)
    fi, fo = ASPECT_DIM + WORD_DIM + HIDDEN_DIM, ASPECT_DIM
    w12 = _xavier_t(ks[4], fi, fo, fi, fo)
    p["w12_s"] = w12[:ASPECT_DIM]
    p["w12_h"] = w12[ASPECT_DIM:ASPECT_DIM + HIDDEN_DIM]
    p["w12_x"] = w12[ASPECT_DIM + HIDDEN_DIM:]
    p["b12"] = jnp.zeros((1, ASPECT_DIM), jnp.float32)
    # linear_eq_13: (hidden + att) -> vocab
    fi, fo = HIDDEN_DIM + ATT_DIM, VOCAB_SZ
    w13 = _xavier_t(ks[5], fi, fo, fi, fo)
    p["w13_h"], p["w13_a"] = w13[:HIDDEN_DIM], w13[HIDDEN_DIM:]
    p["b13"] = jnp.zeros((1, VOCAB_SZ), jnp.float32)
    return p


if __name__ == "__main__":
    key = jax.random.PRNGKey(0)
    kp, k1, k2, k3, k4, k5, k6, k7, k8 = jax.random.split(key, 9)

    params = init_params(kp)

    B, T = BATCH, 4
    input_vector = jax.random.normal(k1, (1, B, WORD_DIM), jnp.float32)
    hidden_state = jax.random.normal(k2, (1, B, HIDDEN_DIM), jnp.float32)
    gamma_u = jax.random.normal(k3, (B, ATT_DIM), jnp.float32)
    gamma_i = jax.random.normal(k4, (B, ATT_DIM), jnp.float32)
    beta_u = jax.random.normal(k5, (B, ASPECT_DIM), jnp.float32)
    beta_i = jax.random.normal(k6, (B, ASPECT_DIM), jnp.float32)
    # binary (vocab, aspect) mask standing in for the sparse review_aspect_mask
    review_aspect_mask = (
        jax.random.uniform(k7, (VOCAB_SZ, ASPECT_DIM)) < 0.1
    ).astype(jnp.float32)

    # 1) module-equivalent single-step forward (seq len 1, as in the torch code)
    out, h_new = decoder_forward(params, input_vector, hidden_state,
                                 gamma_u, gamma_i, beta_u, beta_i,
                                 review_aspect_mask)

    # 2) weights-resident multi-step decode: compose once, loop over T inside
    #    one pallas_call (the high-value restructuring from the perf review).
    weights = compose_decoder_weights(params, review_aspect_mask)
    x_seq = jax.random.normal(k8, (T, B, WORD_DIM), jnp.float32)
    logits, h_fin = decoder_decode(weights, x_seq,
                                   hidden_state.reshape(B, HIDDEN_DIM),
                                   gamma_u, gamma_i, beta_u, beta_i)

    jax.block_until_ready((out, h_new, logits, h_fin))
    assert out.shape == (B, VOCAB_SZ) and h_new.shape == (1, B, HIDDEN_DIM)
    assert logits.shape == (T, B, VOCAB_SZ) and h_fin.shape == (B, HIDDEN_DIM)
    assert bool(jnp.isfinite(out).all()) and bool(jnp.isfinite(logits).all())
    print("KERNEL_OK")
</pallas_src>

<mosaic_0001>
module attributes {stable_mosaic.version = 11 : i64} {
  func.func @decoder_kernel(%arg0: i32, %arg1: memref<1x8x128xf32, #tpu.memory_space<vmem>>, %arg2: memref<8x32xf32, #tpu.memory_space<vmem>>, %arg3: memref<128x128xf32, #tpu.memory_space<vmem>>, %arg4: memref<2x128xf32, #tpu.memory_space<vmem>>, %arg5: memref<128x128xf32, #tpu.memory_space<vmem>>, %arg6: memref<1x128xf32, #tpu.memory_space<vmem>>, %arg7: memref<1x8x128xf32, #tpu.memory_space<vmem>>, %arg8: memref<8x32xf32, #tpu.memory_space<vmem>>) attributes {dimension_semantics = [#tpu.dimension_semantics<arbitrary>], iteration_bounds = array<i64: 1>, scalar_prefetch = 0 : i64, scratch_operands = 0 : i64, tpu.core_type = #tpu.core_type<tc>, window_params = [{transform_indices = @transform_0, window_bounds = array<i64: 1, 8, 128>}, {pipeline_mode = #tpu.pipeline_mode<synchronous>, transform_indices = @transform_1, window_bounds = array<i64: 8, 32>}, {pipeline_mode = #tpu.pipeline_mode<synchronous>, transform_indices = @transform_2, window_bounds = array<i64: 128, 128>}, {pipeline_mode = #tpu.pipeline_mode<synchronous>, transform_indices = @transform_3, window_bounds = array<i64: 2, 128>}, {pipeline_mode = #tpu.pipeline_mode<synchronous>, transform_indices = @transform_4, window_bounds = array<i64: 128, 128>}, {pipeline_mode = #tpu.pipeline_mode<synchronous>, transform_indices = @transform_5, window_bounds = array<i64: 1, 128>}, {transform_indices = @transform_6, window_bounds = array<i64: 1, 8, 128>}, {pipeline_mode = #tpu.pipeline_mode<synchronous>, transform_indices = @transform_7, window_bounds = array<i64: 8, 32>}]} {
    %c0_i32 = arith.constant 0 : i32
    %0 = arith.cmpi eq, %arg0, %c0_i32 : i32
    %1 = arith.extui %0 : i1 to i32
    %c0_i32_0 = arith.constant 0 : i32
    %2 = arith.cmpi ne, %1, %c0_i32_0 : i32
    scf.if %2 {
      %c0_25 = arith.constant 0 : index
      %c0_26 = arith.constant 0 : index
      %82 = vector.load %arg2[%c0_25, %c0_26] : memref<8x32xf32, #tpu.memory_space<vmem>>, vector<8x32xf32>
      %c0_27 = arith.constant 0 : index
      %c0_28 = arith.constant 0 : index
      %83 = vector.load %arg8[%c0_27, %c0_28] : memref<8x32xf32, #tpu.memory_space<vmem>>, vector<8x32xf32>
      tpu.vector_store %arg8[%c0_27, %c0_28], %82 {strides = array<i32>} : memref<8x32xf32, #tpu.memory_space<vmem>>, vector<8x32xf32>,
    } else {
    }
    %c0 = arith.constant 0 : index
    %c0_1 = arith.constant 0 : index
    %c0_2 = arith.constant 0 : index
    %3 = vector.load %arg1[%c0, %c0_1, %c0_2] : memref<1x8x128xf32, #tpu.memory_space<vmem>>, vector<1x8x128xf32>
    %4 = vector.shape_cast %3 : vector<1x8x128xf32> to vector<8x128xf32>
    %c0_3 = arith.constant 0 : index
    %c0_4 = arith.constant 0 : index
    %5 = vector.load %arg8[%c0_3, %c0_4] : memref<8x32xf32, #tpu.memory_space<vmem>>, vector<8x32xf32>
    %c0_5 = arith.constant 0 : index
    %c0_6 = arith.constant 0 : index
    %6 = vector.load %arg4[%c0_5, %c0_6] : memref<2x128xf32, #tpu.memory_space<vmem>>, vector<2x128xf32>
    %7 = vector.extract_strided_slice %4 {offsets = [0, 0], sizes = [8, 32], strides = [1, 1]} : vector<8x128xf32> to vector<8x32xf32>
    %8 = vector.extract_strided_slice %4 {offsets = [0, 64], sizes = [8, 64], strides = [1, 1]} : vector<8x128xf32> to vector<8x64xf32>
    %9 = tpu.concatenate %7, %5, %8 in 1 : vector<8x32xf32>, vector<8x32xf32>, vector<8x64xf32> -> vector<8x128xf32>
    %c0_7 = arith.constant 0 : index
    %c0_8 = arith.constant 0 : index
    %10 = vector.load %arg3[%c0_7, %c0_8] : memref<128x128xf32, #tpu.memory_space<vmem>>, vector<128x128xf32>
    %cst = arith.constant dense<0.000000e+00> : vector<8x128xf32>
    %11 = tpu.matmul %9, %10, %cst {dimension_numbers = #tpu.dot_dimension_numbers<[1], [0], [0], [1], [0, 0, 1, 1], [], []>} : vector<8x128xf32>, vector<128x128xf32>, vector<8x128xf32> -> vector<8x128xf32>
    %12 = vector.extract_strided_slice %6 {offsets = [1, 0], sizes = [1, 128], strides = [1, 1]} : vector<2x128xf32> to vector<1x128xf32>
    %13 = vector.broadcast %12 : vector<1x128xf32> to vector<8x128xf32>
    %14 = arith.addf %11, %13 : vector<8x128xf32>
    %15 = vector.extract_strided_slice %14 {offsets = [0, 0], sizes = [8, 64], strides = [1, 1]} : vector<8x128xf32> to vector<8x64xf32>
    %16 = arith.negf %15 : vector<8x64xf32>
    %17 = math.exp %16 : vector<8x64xf32>
    %cst_9 = arith.constant 1.000000e+00 : f32
    %18 = vector.broadcast %cst_9 : f32 to vector<8x64xf32>
    %19 = arith.addf %18, %17 : vector<8x64xf32>
    %20 = arith.divf %18, %19 : vector<8x64xf32>
    %21 = vector.extract_strided_slice %20 {offsets = [0, 0], sizes = [8, 32], strides = [1, 1]} : vector<8x64xf32> to vector<8x32xf32>
    %22 = vector.extract_strided_slice %20 {offsets = [0, 32], sizes = [8, 32], strides = [1, 1]} : vector<8x64xf32> to vector<8x32xf32>
    %23 = vector.extract_strided_slice %14 {offsets = [0, 64], sizes = [8, 32], strides = [1, 1]} : vector<8x128xf32> to vector<8x32xf32>
    %24 = vector.extract_strided_slice %14 {offsets = [0, 96], sizes = [8, 32], strides = [1, 1]} : vector<8x128xf32> to vector<8x32xf32>
    %25 = arith.mulf %21, %24 : vector<8x32xf32>
    %26 = arith.addf %23, %25 : vector<8x32xf32>
    %27 = math.tanh %26 : vector<8x32xf32>
    %cst_10 = arith.constant 1.000000e+00 : f32
    %28 = vector.broadcast %cst_10 : f32 to vector<8x32xf32>
    %29 = arith.subf %28, %22 : vector<8x32xf32>
    %30 = arith.mulf %29, %27 : vector<8x32xf32>
    %31 = arith.mulf %22, %5 : vector<8x32xf32>
    %32 = arith.addf %30, %31 : vector<8x32xf32>
    %c0_11 = arith.constant 0 : index
    %c0_12 = arith.constant 0 : index
    %33 = vector.load %arg8[%c0_11, %c0_12] : memref<8x32xf32, #tpu.memory_space<vmem>>, vector<8x32xf32>
    tpu.vector_store %arg8[%c0_11, %c0_12], %32 {strides = array<i32>} : memref<8x32xf32, #tpu.memory_space<vmem>>, vector<8x32xf32>,
    %34 = vector.extract_strided_slice %6 {offsets = [0, 0], sizes = [1, 128], strides = [1, 1]} : vector<2x128xf32> to vector<1x128xf32>
    %35 = vector.extract_strided_slice %34 {offsets = [0, 0], sizes = [1, 16], strides = [1, 1]} : vector<1x128xf32> to vector<1x16xf32>
    %36 = vector.extract_strided_slice %34 {offsets = [0, 16], sizes = [1, 32], strides = [1, 1]} : vector<1x128xf32> to vector<1x32xf32>
    %37 = vector.extract_strided_slice %34 {offsets = [0, 48], sizes = [1, 1], strides = [1, 1]} : vector<1x128xf32> to vector<1x1xf32>
    %38 = vector.extract_strided_slice %4 {offsets = [0, 64], sizes = [8, 16], strides = [1, 1]} : vector<8x128xf32> to vector<8x16xf32>
    %39 = vector.extract_strided_slice %4 {offsets = [0, 80], sizes = [8, 16], strides = [1, 1]} : vector<8x128xf32> to vector<8x16xf32>
    %40 = vector.broadcast %36 : vector<1x32xf32> to vector<8x32xf32>
    %41 = arith.mulf %32, %40 : vector<8x32xf32>
    %cst_13 = arith.constant dense<0.000000e+00> : vector<8xf32>
    %42 = vector.multi_reduction <add>, %41, %cst_13 [1] : vector<8x32xf32> to vector<8xf32>
    %43 = vector.shape_cast %42 : vector<8xf32> to vector<8x1xf32>
    %44 = vector.broadcast %37 : vector<1x1xf32> to vector<8x1xf32>
    %45 = arith.addf %43, %44 : vector<8x1xf32>
    %46 = vector.broadcast %35 : vector<1x16xf32> to vector<8x16xf32>
    %47 = arith.mulf %38, %46 : vector<8x16xf32>
    %cst_14 = arith.constant dense<0.000000e+00> : vector<8xf32>
    %48 = vector.multi_reduction <add>, %47, %cst_14 [1] : vector<8x16xf32> to vector<8xf32>
    %49 = vector.shape_cast %48 : vector<8xf32> to vector<8x1xf32>
    %50 = arith.addf %49, %45 : vector<8x1xf32>
    %51 = math.tanh %50 : vector<8x1xf32>
    %52 = vector.broadcast %35 : vector<1x16xf32> to vector<8x16xf32>
    %53 = arith.mulf %39, %52 : vector<8x16xf32>
    %cst_15 = arith.constant dense<0.000000e+00> : vector<8xf32>
    %54 = vector.multi_reduction <add>, %53, %cst_15 [1] : vector<8x16xf32> to vector<8xf32>
    %55 = vector.shape_cast %54 : vector<8xf32> to vector<8x1xf32>
    %56 = arith.addf %55, %45 : vector<8x1xf32>
    %57 = math.tanh %56 : vector<8x1xf32>
    %58 = math.exp %51 : vector<8x1xf32>
    %59 = math.exp %57 : vector<8x1xf32>
    %60 = arith.addf %58, %59 : vector<8x1xf32>
    %cst_16 = arith.constant 9.99999997E-7 : f32
    %61 = vector.broadcast %cst_16 : f32 to vector<8x1xf32>
    %62 = arith.addf %60, %61 : vector<8x1xf32>
    %63 = tpu.reciprocal %62 {approx = true} : vector<8x1xf32> -> vector<8x1xf32>
    %64 = arith.mulf %58, %63 : vector<8x1xf32>
    %65 = vector.broadcast %64 : vector<8x1xf32> to vector<8x16xf32>
    %66 = arith.mulf %65, %38 : vector<8x16xf32>
    %67 = arith.mulf %59, %63 : vector<8x1xf32>
    %68 = vector.broadcast %67 : vector<8x1xf32> to vector<8x16xf32>
    %69 = arith.mulf %68, %39 : vector<8x16xf32>
    %70 = arith.addf %66, %69 : vector<8x16xf32>
    %71 = vector.extract_strided_slice %4 {offsets = [0, 0], sizes = [8, 32], strides = [1, 1]} : vector<8x128xf32> to vector<8x32xf32>
    %72 = vector.extract_strided_slice %4 {offsets = [0, 80], sizes = [8, 48], strides = [1, 1]} : vector<8x128xf32> to vector<8x48xf32>
    %73 = tpu.concatenate %71, %32, %70, %72 in 1 : vector<8x32xf32>, vector<8x32xf32>, vector<8x16xf32>, vector<8x48xf32> -> vector<8x128xf32>
    %c0_17 = arith.constant 0 : index
    %c0_18 = arith.constant 0 : index
    %74 = vector.load %arg5[%c0_17, %c0_18] : memref<128x128xf32, #tpu.memory_space<vmem>>, vector<128x128xf32>
    %cst_19 = arith.constant dense<0.000000e+00> : vector<8x128xf32>
    %75 = tpu.matmul %73, %74, %cst_19 {dimension_numbers = #tpu.dot_dimension_numbers<[1], [0], [0], [1], [0, 0, 1, 1], [], []>} : vector<8x128xf32>, vector<128x128xf32>, vector<8x128xf32> -> vector<8x128xf32>
    %c0_20 = arith.constant 0 : index
    %c0_21 = arith.constant 0 : index
    %76 = vector.load %arg6[%c0_20, %c0_21] : memref<1x128xf32, #tpu.memory_space<vmem>>, vector<1x128xf32>
    %77 = vector.broadcast %76 : vector<1x128xf32> to vector<8x128xf32>
    %78 = arith.addf %75, %77 : vector<8x128xf32>
    %c0_22 = arith.constant 0 : index
    %c0_23 = arith.constant 0 : index
    %c0_24 = arith.constant 0 : index
    %79 = vector.load %arg7[%c0_22, %c0_23, %c0_24] : memref<1x8x128xf32, #tpu.memory_space<vmem>>, vector<1x8x128xf32>
    %80 = vector.shape_cast %79 : vector<1x8x128xf32> to vector<8x128xf32>
    %81 = vector.shape_cast %78 : vector<8x128xf32> to vector<1x8x128xf32>
    tpu.vector_store %arg7[%c0_22, %c0_23, %c0_24], %81 {strides = array<i32>} : memref<1x8x128xf32, #tpu.memory_space<vmem>>, vector<1x8x128xf32>,
    return
  }
  func.func @transform_0(%arg0: i32) -> (i32, i32, i32) {
    %c0_i32 = arith.constant 0 : i32
    %c0_i32_0 = arith.constant 0 : i32
    %c0_i32_1 = arith.constant 0 : i32
    return %arg0, %c0_i32, %c0_i32_0 : i32, i32, i32
  }
  func.func @transform_1(%arg0: i32) -> (i32, i32) {
    %c0_i32 = arith.constant 0 : i32
    %c0_i32_0 = arith.constant 0 : i32
    %c0_i32_1 = arith.constant 0 : i32
    return %c0_i32, %c0_i32_0 : i32, i32
  }
  func.func @transform_2(%arg0: i32) -> (i32, i32) {
    %c0_i32 = arith.constant 0 : i32
    %c0_i32_0 = arith.constant 0 : i32
    %c0_i32_1 = arith.constant 0 : i32
    return %c0_i32, %c0_i32_0 : i32, i32
  }
  func.func @transform_3(%arg0: i32) -> (i32, i32) {
    %c0_i32 = arith.constant 0 : i32
    %c0_i32_0 = arith.constant 0 : i32
    %c0_i32_1 = arith.constant 0 : i32
    return %c0_i32, %c0_i32_0 : i32, i32
  }
  func.func @transform_4(%arg0: i32) -> (i32, i32) {
    %c0_i32 = arith.constant 0 : i32
    %c0_i32_0 = arith.constant 0 : i32
    %c0_i32_1 = arith.constant 0 : i32
    return %c0_i32, %c0_i32_0 : i32, i32
  }
  func.func @transform_5(%arg0: i32) -> (i32, i32) {
    %c0_i32 = arith.constant 0 : i32
    %c0_i32_0 = arith.constant 0 : i32
    %c0_i32_1 = arith.constant 0 : i32
    return %c0_i32, %c0_i32_0 : i32, i32
  }
  func.func @transform_6(%arg0: i32) -> (i32, i32, i32) {
    %c0_i32 = arith.constant 0 : i32
    %c0_i32_0 = arith.constant 0 : i32
    %c0_i32_1 = arith.constant 0 : i32
    return %arg0, %c0_i32, %c0_i32_0 : i32, i32, i32
  }
  func.func @transform_7(%arg0: i32) -> (i32, i32) {
    %c0_i32 = arith.constant 0 : i32
    %c0_i32_0 = arith.constant 0 : i32
    %c0_i32_1 = arith.constant 0 : i32
    return %c0_i32, %c0_i32_0 : i32, i32
  }
}

</mosaic_0001>

<llo_original>
// kernel: tpu_custom_call.1
$region0: #{tpu_custom_call.1}
  #allocation0 [shape = 'u32[]', space=smem, size = 0x4, offset = 0x4, fixed_abs, tag = 'smem constant byte address 0x4 - core index']
  #allocation1 [shape = 'u32[144,128]{1,0:T(1,128)}', space=vmem, size = 0x12000, scoped, tag = 'internal scratch']
  %s0 = inlined_call_operand.hbm [shape: f32[1,8,128], index: 0, kind: input, shape index: {}]
  %s1 = inlined_call_operand.hbm [shape: f32[8,32], index: 1, kind: input, shape index: {}]
  %s2 = inlined_call_operand.hbm [shape: f32[128,128], index: 2, kind: input, shape index: {}]
  %s3 = inlined_call_operand.vmem [shape: f32[2,128], index: 3, kind: input, shape index: {}]
  %s4 = inlined_call_operand.hbm [shape: f32[128,128], index: 4, kind: input, shape index: {}]
  %s5 = inlined_call_operand.vmem [shape: f32[1,128], index: 5, kind: input, shape index: {}]
  %s6 = inlined_call_operand.hbm [shape: f32[1,8,128], index: 6, kind: output, shape index: {0}]
  %s7 = inlined_call_operand.hbm [shape: f32[8,32], index: 7, kind: output, shape index: {1}]
  %8 = xla_tuple %s6, %s7
  %s9 = sld [smem:[#allocation0]]
  $region62: #{tpu_custom_call.1} parent=0
    _
  %s11 = ssub.s32 1, %s9
  %s12 = scalar_select 0, %s11, %s9
  $region1: #{tpu_custom_call.1} parent=0
    #allocation2 [shape = 'u8[4096]{0}', space=vmem, size = 0x1000, scoped, tag = 'input window, operand 0, single buffered']
    #allocation3 [shape = 's32[1]{0}', space=sflag, size = 0x4, scoped, tag = 'scoped memory for tpu_custom_call.1']
    #allocation4 [shape = 's32[1]{0}', space=sflag, size = 0x4, scoped, tag = 'scoped memory for tpu_custom_call.1']
    #allocation5 [shape = 'u8[4096]{0}', space=vmem, size = 0x1000, scoped, tag = 'input window, operand 1, single buffered']
    #allocation6 [shape = 's32[1]{0}', space=sflag, size = 0x4, scoped, tag = 'scoped memory for tpu_custom_call.1']
    #allocation7 [shape = 'u8[65536]{0}', space=vmem, size = 0x10000, scoped, tag = 'input window, operand 2, single buffered']
    #allocation8 [shape = 'u8[65536]{0}', space=vmem, size = 0x10000, scoped, tag = 'input window, operand 4, single buffered']
    #allocation9 [shape = 's32[1]{0}', space=sflag, size = 0x4, scoped, tag = 'scoped memory for tpu_custom_call.1']
    #allocation10 [shape = 'u8[4096]{0}', space=vmem, size = 0x1000, scoped, tag = 'output window, operand 0, single buffered']
    #allocation11 [shape = 'u8[4096]{0}', space=vmem, size = 0x1000, scoped, tag = 'output window, operand 1, single buffered']
    #allocation12 [shape = 's32[1]{0}', space=sflag, size = 0x4, scoped, tag = 'scoped memory for tpu_custom_call.1']
    %13 = vsyncpa [#allocation3], 0
    %14 = vsyncpa [#allocation6], 0
    %15 = vsyncpa [#allocation9], 0
    %16 = vsyncpa [#allocation4], 0
    %17 = vsyncpa [#allocation12], 0
    // Predicated region
    $region2: #{tpu_custom_call.1} parent=1 // pred_check
      _
    $region3: #{tpu_custom_call.1} parent=1 // pred_check_branch
      %19 = sbr.rel (0) target = $region5
    $region4: #{tpu_custom_call.1} parent=1 // pred_region
      %s21 = ssub.s32 128, 128
      %22 = vsyncadd [#allocation3], %s21
      %s24 = sshll.u32 [#allocation2], 4
      %s25 = int_to_ptr.vmem [resolvable:$true] %s24
      %27 = dma.hbm_to_vmem [thread:$0]  %s0, 128, %s25, [#allocation3]
    $region5: #{tpu_custom_call.1} parent=1 // pred_fallthru
      _
    // Predicated region
    $region6: #{tpu_custom_call.1} parent=1 // pred_check
      _
    $region7: #{tpu_custom_call.1} parent=1 // pred_check_branch
      %29 = sbr.rel (0) target = $region9
    $region8: #{tpu_custom_call.1} parent=1 // pred_region
      %s31 = ssub.s32 128, 128
      %32 = vsyncadd [#allocation6], %s31
      %s34 = sshll.u32 [#allocation5], 4
      %s35 = int_to_ptr.vmem [resolvable:$true] %s34
      %37 = dma.hbm_to_vmem [thread:$0]  %s1, 128, %s35, [#allocation6]
    $region9: #{tpu_custom_call.1} parent=1 // pred_fallthru
      _
    // Predicated region
    $region10: #{tpu_custom_call.1} parent=1 // pred_check
      _
    $region11: #{tpu_custom_call.1} parent=1 // pred_check_branch
      %39 = sbr.rel (0) target = $region13
    $region12: #{tpu_custom_call.1} parent=1 // pred_region
      %s41 = ssub.s32 2048, 2048
      %42 = vsyncadd [#allocation6], %s41
      %s43 = sshll.u32 [#allocation7], 4
      %s44 = int_to_ptr.vmem [resolvable:$true] %s43
      %49 = dma.hbm_to_vmem [thread:$0]  %s2, 2048, %s44, [#allocation6], 128, 128, 8
    $region13: #{tpu_custom_call.1} parent=1 // pred_fallthru
      _
    // Predicated region
    $region14: #{tpu_custom_call.1} parent=1 // pred_check
      _
    $region15: #{tpu_custom_call.1} parent=1 // pred_check_branch
      %51 = sbr.rel (0) target = $region17
    $region16: #{tpu_custom_call.1} parent=1 // pred_region
      _
    $region17: #{tpu_custom_call.1} parent=1 // pred_fallthru
      _
    // Predicated region
    $region18: #{tpu_custom_call.1} parent=1 // pred_check
      _
    $region19: #{tpu_custom_call.1} parent=1 // pred_check_branch
      %53 = sbr.rel (0) target = $region21
    $region20: #{tpu_custom_call.1} parent=1 // pred_region
      %s55 = ssub.s32 2048, 2048
      %56 = vsyncadd [#allocation9], %s55
      %s57 = sshll.u32 [#allocation8], 4
      %s58 = int_to_ptr.vmem [resolvable:$true] %s57
      %63 = dma.hbm_to_vmem [thread:$0]  %s4, 2048, %s58, [#allocation9], 128, 128, 8
    $region21: #{tpu_custom_call.1} parent=1 // pred_fallthru
      _
    // Predicated region
    $region22: #{tpu_custom_call.1} parent=1 // pred_check
      _
    $region23: #{tpu_custom_call.1} parent=1 // pred_check_branch
      %65 = sbr.rel (0) target = $region25
    $region24: #{tpu_custom_call.1} parent=1 // pred_region
      _
    $region25: #{tpu_custom_call.1} parent=1 // pred_fallthru
      _
    // Predicated region
    $region26: #{tpu_custom_call.1} parent=1 // pred_check
      _
    $region27: #{tpu_custom_call.1} parent=1 // pred_check_branch
      %67 = sbr.rel (0) target = $region29
    $region28: #{tpu_custom_call.1} parent=1 // pred_region
      %68 = dma.done [#allocation3], 128
    $region29: #{tpu_custom_call.1} parent=1 // pred_fallthru
      _
    // Predicated region
    $region30: #{tpu_custom_call.1} parent=1 // pred_check
      _
    $region31: #{tpu_custom_call.1} parent=1 // pred_check_branch
      %70 = sbr.rel (0) target = $region33
    $region32: #{tpu_custom_call.1} parent=1 // pred_region
      %71 = dma.done [#allocation6], 128
    $region33: #{tpu_custom_call.1} parent=1 // pred_fallthru
      _
    // Predicated region
    $region34: #{tpu_custom_call.1} parent=1 // pred_check
      _
    $region35: #{tpu_custom_call.1} parent=1 // pred_check_branch
      %73 = sbr.rel (0) target = $region37
    $region36: #{tpu_custom_call.1} parent=1 // pred_region
      %74 = dma.done [#allocation6], 2048
    $region37: #{tpu_custom_call.1} parent=1 // pred_fallthru
      _
    // Predicated region
    $region38: #{tpu_custom_call.1} parent=1 // pred_check
      _
    $region39: #{tpu_custom_call.1} parent=1 // pred_check_branch
      %76 = sbr.rel (0) target = $region41
    $region40: #{tpu_custom_call.1} parent=1 // pred_region
      %77 = dma.done [#allocation9], 2048
    $region41: #{tpu_custom_call.1} parent=1 // pred_fallthru
      _
    %p78 = scmp.eq.s32.totalorder 0, 0
    // Predicated region
    $region42: #{tpu_custom_call.1} parent=1 // pred_check
      %p79 = pneg %p78
    $region43: #{tpu_custom_call.1} parent=1 // pred_check_branch
      %81 = sbr.rel (%p79) target = $region45
    $region44: #{tpu_custom_call.1} parent=1 // pred_region
      %v82 = vld [vmem:[#allocation5] sm:$0xff]
      %vm83 = vcmask 261120
      %84 = vst.msk [vmem:[#allocation11] sm:$0xff] %vm83, %v82
    $region45: #{tpu_custom_call.1} parent=1 // pred_fallthru
      _
    %v85 = vld [vmem:[#allocation2] sm:$0xff]
    %v86 = vld [vmem:[#allocation11] sm:$0xff]
    %v87 = vld [vmem:[%s3] sm:$0x3]
    %89 = vrot.lane.b32.xlu0 %v86, 32
    %v90 = vpop.permute.xlu0 %89
    %vm92 = vcmask 261120
    %v93 = vsel %vm92, %v85, %v90
    %vm94 = vcmask 523264
    %v95 = vsel %vm94, %v93, %v85
    %v96 = vld [vmem:[#allocation7] sm:$0xff]
    %v97 = vld [vmem:[#allocation7 + $0x8] sm:$0xff]
    %v98 = vld [vmem:[#allocation7 + $0x10] sm:$0xff]
    %v99 = vld [vmem:[#allocation7 + $0x18] sm:$0xff]
    %v100 = vld [vmem:[#allocation7 + $0x20] sm:$0xff]
    %v101 = vld [vmem:[#allocation7 + $0x28] sm:$0xff]
    %v102 = vld [vmem:[#allocation7 + $0x30] sm:$0xff]
    %v103 = vld [vmem:[#allocation7 + $0x38] sm:$0xff]
    %v104 = vld [vmem:[#allocation7 + $0x40] sm:$0xff]
    %v105 = vld [vmem:[#allocation7 + $0x48] sm:$0xff]
    %v106 = vld [vmem:[#allocation7 + $0x50] sm:$0xff]
    %v107 = vld [vmem:[#allocation7 + $0x58] sm:$0xff]
    %v108 = vld [vmem:[#allocation7 + $0x60] sm:$0xff]
    %v109 = vld [vmem:[#allocation7 + $0x68] sm:$0xff]
    %v110 = vld [vmem:[#allocation7 + $0x70] sm:$0xff]
    %v111 = vld [vmem:[#allocation7 + $0x78] sm:$0xff]
    %v112 = vlaneseq
    %v113 = vshrl.u32 %v112, 7
    %v114 = vsub.s32 1, %v113
    %v115 = vrot.slane %v87, %v114
    %116 = vmatprep.subr.mxu0 0.0
    %117 = vmatpush1.msra.mxu0 %v111
    %118 = vmatprep.subr.mxu0 0.0
    %119 = vmatpush1.msra.mxu0 %v110
    %120 = vmatprep.subr.mxu0 0.0
    %121 = vmatpush1.msra.mxu0 %v109
    %122 = vmatprep.subr.mxu0 0.0
    %123 = vmatpush1.msra.mxu0 %v108
    %124 = vmatprep.subr.mxu0 0.0
    %125 = vmatpush1.msra.mxu0 %v107
    %126 = vmatprep.subr.mxu0 0.0
    %127 = vmatpush1.msra.mxu0 %v106
    %128 = vmatprep.subr.mxu0 0.0
    %129 = vmatpush1.msra.mxu0 %v105
    %130 = vmatprep.subr.mxu0 0.0
    %131 = vmatpush1.msra.mxu0 %v104
    %132 = vmatprep.subr.mxu0 0.0
    %133 = vmatpush1.msra.mxu0 %v103
    %134 = vmatprep.subr.mxu0 0.0
    %135 = vmatpush1.msra.mxu0 %v102
    %136 = vmatprep.subr.mxu0 0.0
    %137 = vmatpush1.msra.mxu0 %v101
    %138 = vmatprep.subr.mxu0 0.0
    %139 = vmatpush1.msra.mxu0 %v100
    %140 = vmatprep.subr.mxu0 0.0
    %141 = vmatpush1.msra.mxu0 %v99
    %142 = vmatprep.subr.mxu0 0.0
    %143 = vmatpush1.msra.mxu0 %v98
    %144 = vmatprep.subr.mxu0 0.0
    %145 = vmatpush1.msra.mxu0 %v97
    %146 = vmatprep.subr.mxu0 0.0
    %147 = vmatpush1.msra.mxu0 %v96
    %148 = vmatprep.subr.mxu0 0.0
    %149 = vmatpush2.msra.mxu0 0.0
    %150 = vmatprep.subr.mxu0 0.0
    %151 = vmatpush2.msra.mxu0 0.0
    %152 = vmatprep.subr.mxu0 0.0
    %153 = vmatpush2.msra.mxu0 0.0
    %154 = vmatprep.subr.mxu0 0.0
    %155 = vmatpush2.msra.mxu0 0.0
    %156 = vmatprep.subr.mxu0 0.0
    %157 = vmatpush2.msra.mxu0 0.0
    %158 = vmatprep.subr.mxu0 0.0
    %159 = vmatpush2.msra.mxu0 0.0
    %160 = vmatprep.subr.mxu0 0.0
    %161 = vmatpush2.msra.mxu0 0.0
    %162 = vmatprep.subr.mxu0 0.0
    %163 = vmatpush2.msra.mxu0 0.0
    %164 = vmatprep.subr.mxu0 0.0
    %165 = vmatpush2.msra.mxu0 0.0
    %166 = vmatprep.subr.mxu0 0.0
    %167 = vmatpush2.msra.mxu0 0.0
    %168 = vmatprep.subr.mxu0 0.0
    %169 = vmatpush2.msra.mxu0 0.0
    %170 = vmatprep.subr.mxu0 0.0
    %171 = vmatpush2.msra.mxu0 0.0
    %172 = vmatprep.subr.mxu0 0.0
    %173 = vmatpush2.msra.mxu0 0.0
    %174 = vmatprep.subr.mxu0 0.0
    %175 = vmatpush2.msra.mxu0 0.0
    %176 = vmatprep.subr.mxu0 0.0
    %177 = vmatpush2.msra.mxu0 0.0
    %178 = vmatprep.subr.mxu0 0.0
    %179 = vmatpush2.msra.mxu0 0.0
    %180 = vmatprep.mubr.f32.mxu0 0.0
    %181 = vmatmul.mubr.f32.gmra.mxu0 %v95
    %v182 = vpop.f32.mrf.mxu0
    %v183 = vadd.f32 %v115, %v182
    %v184 = vpop.f32.mrf.mxu0
    %185 = vdwg.mxu0
    %v186 = vxor.u32 %v183, 2147483648
    %v187 = vmul.f32 %v186, 1.442695
    %v188 = vpow.pop %v187
    %v189 = vadd.f32 %v188, 1.0
    %v190 = vrcp.pop %v189
    %v191 = vmul.f32 1.0, %v190
    %193 = vrot.lane.b32.xlu0 %v183, 32
    %v194 = vpop.permute.xlu0 %193
    %v196 = vmul.f32 %v191, %v194
    %198 = vrot.lane.b32.xlu0 %v196, 64
    %v199 = vpop.permute.xlu0 %198
    %v201 = vadd.f32 %v183, %v199
    %v202 = vtanh.pop %v201
    %v203 = vsub.f32 1.0, %v191
    %205 = vrot.lane.b32.xlu0 %v202, 96
    %v206 = vpop.permute.xlu0 %205
    %v208 = vmul.f32 %v203, %v206
    %v209 = vmul.f32 %v191, %v90
    %v210 = vadd.f32 %v208, %v209
    %212 = vrot.lane.b32.xlu0 %v210, 96
    %v213 = vpop.permute.xlu0 %212
    %215 = vst.msk [vmem:[#allocation11] sm:$0xff] %vm92, %v213
    %v216 = vlaneseq
    %v217 = vshrl.u32 %v216, 7
    %v218 = vsub.s32 0, %v217
    %v219 = vrot.slane %v87, %v218
    %221 = vrot.lane.b32.xlu0 %v219, 16
    %v222 = vpop.permute.xlu0 %221
    %v224 = vmul.f32 %v210, %v222
    %226 = vrot.lane.b32.xlu0 %v224, 96
    %v227 = vpop.permute.xlu0 %226
    %v229 = vsel %vm92, %v227, 0.0
    %230 = vadd.xlane.f32.xlu0 %v229
    %v231 = vpop.xlane.xlu0 %230
    %v232 = vadd.f32 %v231, %v219
    %233 = vrot.lane.b32.xlu0 %v219, 64
    %v234 = vpop.permute.xlu0 %233
    %v236 = vmul.f32 %v85, %v234
    %238 = vrot.lane.b32.xlu0 %v236, 64
    %v239 = vpop.permute.xlu0 %238
    %vm241 = vcmask 130048
    %v242 = vsel %vm241, %v239, 0.0
    %243 = vadd.xlane.f32.xlu0 %v242
    %v244 = vpop.xlane.xlu0 %243
    %v245 = vadd.f32 %v244, %v232
    %v246 = vtanh.pop %v245
    %247 = vrot.lane.b32.xlu0 %v219, 80
    %v248 = vpop.permute.xlu0 %247
    %v250 = vmul.f32 %v85, %v248
    %252 = vrot.lane.b32.xlu0 %v250, 48
    %v253 = vpop.permute.xlu0 %252
    %v255 = vsel %vm241, %v253, 0.0
    %256 = vadd.xlane.f32.xlu0 %v255
    %v257 = vpop.xlane.xlu0 %256
    %v258 = vadd.f32 %v257, %v232
    %v259 = vtanh.pop %v258
    %v260 = vmul.f32 %v246, 1.442695
    %v261 = vpow.pop %v260
    %v262 = vmul.f32 %v259, 1.442695
    %v263 = vpow.pop %v262
    %v264 = vadd.f32 %v261, %v263
    %v265 = vadd.f32 %v264, 1e-06
    %v266 = vrcp.pop %v265
    %v267 = vmul.f32 %v261, %v266
    %269 = vset.pattern.permute.xlu0 48
    %270 = vperm.xlu0 %269, %v267
    %v271 = vpop.permute.xlu0 %270
    %v273 = vmul.f32 %v271, %v85
    %v274 = vmul.f32 %v263, %v266
    %276 = vset.pattern.permute.xlu0 48
    %277 = vperm.xlu0 %276, %v274
    %v278 = vpop.permute.xlu0 %277
    %v280 = vmul.f32 %v278, %v85
    %282 = vrot.lane.b32.xlu0 %v280, 112
    %v283 = vpop.permute.xlu0 %282
    %v285 = vadd.f32 %v273, %v283
    %v286 = vsel %vm92, %v85, %v210
    %v287 = vsel %vm94, %v286, %v285
    %vm288 = vcmask 654336
    %v289 = vsel %vm288, %v287, %v85
    %v290 = vld [vmem:[#allocation8] sm:$0xff]
    %v291 = vld [vmem:[#allocation8 + $0x8] sm:$0xff]
    %v292 = vld [vmem:[#allocation8 + $0x10] sm:$0xff]
    %v293 = vld [vmem:[#allocation8 + $0x18] sm:$0xff]
    %v294 = vld [vmem:[#allocation8 + $0x20] sm:$0xff]
    %v295 = vld [vmem:[#allocation8 + $0x28] sm:$0xff]
    %v296 = vld [vmem:[#allocation8 + $0x30] sm:$0xff]
    %v297 = vld [vmem:[#allocation8 + $0x38] sm:$0xff]
    %v298 = vld [vmem:[#allocation8 + $0x40] sm:$0xff]
    %v299 = vld [vmem:[#allocation8 + $0x48] sm:$0xff]
    %v300 = vld [vmem:[#allocation8 + $0x50] sm:$0xff]
    %v301 = vld [vmem:[#allocation8 + $0x58] sm:$0xff]
    %v302 = vld [vmem:[#allocation8 + $0x60] sm:$0xff]
    %v303 = vld [vmem:[#allocation8 + $0x68] sm:$0xff]
    %v304 = vld [vmem:[#allocation8 + $0x70] sm:$0xff]
    %v305 = vld [vmem:[#allocation8 + $0x78] sm:$0xff]
    %v306 = vld [vmem:[%s5] sm:$0x1]
    %v308 = vlaneseq
    %v309 = vshrl.u32 %v308, 7
    %v310 = vsub.s32 0, %v309
    %v311 = vrot.slane %v306, %v310
    %313 = vmatprep.subr.mxu0 0.0
    %314 = vmatpush1.msra.mxu0 %v305
    %315 = vmatprep.subr.mxu0 0.0
    %316 = vmatpush1.msra.mxu0 %v304
    %317 = vmatprep.subr.mxu0 0.0
    %318 = vmatpush1.msra.mxu0 %v303
    %319 = vmatprep.subr.mxu0 0.0
    %320 = vmatpush1.msra.mxu0 %v302
    %321 = vmatprep.subr.mxu0 0.0
    %322 = vmatpush1.msra.mxu0 %v301
    %323 = vmatprep.subr.mxu0 0.0
    %324 = vmatpush1.msra.mxu0 %v300
    %325 = vmatprep.subr.mxu0 0.0
    %326 = vmatpush1.msra.mxu0 %v299
    %327 = vmatprep.subr.mxu0 0.0
    %328 = vmatpush1.msra.mxu0 %v298
    %329 = vmatprep.subr.mxu0 0.0
    %330 = vmatpush1.msra.mxu0 %v297
    %331 = vmatprep.subr.mxu0 0.0
    %332 = vmatpush1.msra.mxu0 %v296
    %333 = vmatprep.subr.mxu0 0.0
    %334 = vmatpush1.msra.mxu0 %v295
    %335 = vmatprep.subr.mxu0 0.0
    %336 = vmatpush1.msra.mxu0 %v294
    %337 = vmatprep.subr.mxu0 0.0
    %338 = vmatpush1.msra.mxu0 %v293
    %339 = vmatprep.subr.mxu0 0.0
    %340 = vmatpush1.msra.mxu0 %v292
    %341 = vmatprep.subr.mxu0 0.0
    %342 = vmatpush1.msra.mxu0 %v291
    %343 = vmatprep.subr.mxu0 0.0
    %344 = vmatpush1.msra.mxu0 %v290
    %345 = vmatprep.subr.mxu0 0.0
    %346 = vmatpush2.msra.mxu0 0.0
    %347 = vmatprep.subr.mxu0 0.0
    %348 = vmatpush2.msra.mxu0 0.0
    %349 = vmatprep.subr.mxu0 0.0
    %350 = vmatpush2.msra.mxu0 0.0
    %351 = vmatprep.subr.mxu0 0.0
    %352 = vmatpush2.msra.mxu0 0.0
    %353 = vmatprep.subr.mxu0 0.0
    %354 = vmatpush2.msra.mxu0 0.0
    %355 = vmatprep.subr.mxu0 0.0
    %356 = vmatpush2.msra.mxu0 0.0
    %357 = vmatprep.subr.mxu0 0.0
    %358 = vmatpush2.msra.mxu0 0.0
    %359 = vmatprep.subr.mxu0 0.0
    %360 = vmatpush2.msra.mxu0 0.0
    %361 = vmatprep.subr.mxu0 0.0
    %362 = vmatpush2.msra.mxu0 0.0
    %363 = vmatprep.subr.mxu0 0.0
    %364 = vmatpush2.msra.mxu0 0.0
    %365 = vmatprep.subr.mxu0 0.0
    %366 = vmatpush2.msra.mxu0 0.0
    %367 = vmatprep.subr.mxu0 0.0
    %368 = vmatpush2.msra.mxu0 0.0
    %369 = vmatprep.subr.mxu0 0.0
    %370 = vmatpush2.msra.mxu0 0.0
    %371 = vmatprep.subr.mxu0 0.0
    %372 = vmatpush2.msra.mxu0 0.0
    %373 = vmatprep.subr.mxu0 0.0
    %374 = vmatpush2.msra.mxu0 0.0
    %375 = vmatprep.subr.mxu0 0.0
    %376 = vmatpush2.msra.mxu0 0.0
    %377 = vmatprep.mubr.f32.mxu0 0.0
    %378 = vmatmul.mubr.f32.gmra.mxu0 %v289
    %v379 = vpop.f32.mrf.mxu0
    %v380 = vadd.f32 %v311, %v379
    %v381 = vpop.f32.mrf.mxu0
    %382 = vdwg.mxu0
    %383 = vst [vmem:[#allocation10] sm:$0xff] %v380
    // Predicated region
    $region46: #{tpu_custom_call.1} parent=1 // pred_check
      _
    $region47: #{tpu_custom_call.1} parent=1 // pred_check_branch
      %385 = sbr.rel (0) target = $region49
    $region48: #{tpu_custom_call.1} parent=1 // pred_region
      %s387 = ssub.s32 128, 128
      %388 = vsyncadd [#allocation4], %s387
      %s390 = sshll.u32 [#allocation10], 4
      %s391 = int_to_ptr.vmem [resolvable:$true] %s390
      %393 = dma.vmem_to_hbm [thread:$0]  %s391, 128, %s6, [#allocation4]
    $region49: #{tpu_custom_call.1} parent=1 // pred_fallthru
      _
    // Predicated region
    $region50: #{tpu_custom_call.1} parent=1 // pred_check
      _
    $region51: #{tpu_custom_call.1} parent=1 // pred_check_branch
      %395 = sbr.rel (0) target = $region53
    $region52: #{tpu_custom_call.1} parent=1 // pred_region
      %s397 = ssub.s32 128, 128
      %398 = vsyncadd [#allocation12], %s397
      %s400 = sshll.u32 [#allocation11], 4
      %s401 = int_to_ptr.vmem [resolvable:$true] %s400
      %403 = dma.vmem_to_hbm [thread:$0]  %s401, 128, %s7, [#allocation12]
    $region53: #{tpu_custom_call.1} parent=1 // pred_fallthru
      _
    // Predicated region
    $region54: #{tpu_custom_call.1} parent=1 // pred_check
      _
    $region55: #{tpu_custom_call.1} parent=1 // pred_check_branch
      %405 = sbr.rel (0) target = $region57
    $region56: #{tpu_custom_call.1} parent=1 // pred_region
      %406 = dma.done [#allocation4], 128
    $region57: #{tpu_custom_call.1} parent=1 // pred_fallthru
      _
    // Predicated region
    $region58: #{tpu_custom_call.1} parent=1 // pred_check
      _
    $region59: #{tpu_custom_call.1} parent=1 // pred_check_branch
      %408 = sbr.rel (0) target = $region61
    $region60: #{tpu_custom_call.1} parent=1 // pred_region
      %409 = dma.done [#allocation12], 128
    $region61: #{tpu_custom_call.1} parent=1 // pred_fallthru
      _
    %410 = vsyncpa [#allocation3], 1
    %411 = vsyncpa [#allocation6], 1
    %412 = vsyncpa [#allocation9], 1
    %413 = vsyncpa [#allocation4], 1
    %414 = vsyncpa [#allocation12], 1

</llo_original>
